<compile_context>
chip_gen: v7x
topology: tpu7x:2x2x1
jax: 0.10.0
libtpu: 0.0.40
codegen_flags: <defaults>
</compile_context>

<pallas_src>
import jax
import jax.numpy as jnp
import numpy as np
from jax.experimental import pallas as pl
from jax.experimental.pallas import tpu as pltpu

FEAT_DIM = 64          # stand-in for resnet50's 2048-dim pooled features
COS_EPS = 1e-8         # matches torch.nn.functional.cosine_similarity default
LANE = 128
ACC_W_BASE = 2048      # accumulator width / column-chunk fold granularity


def _round_up(x, m):
    return ((x + m - 1) // m) * m


def _make_dpe_kernel(*, n_total, hw, batch, bc, tcol, acc_w, n_tiles, eps):
    """Build the kernel body with all shape constants closed over (static)."""
    inv_n = 1.0 / float(n_total)
    inv_hw = 1.0 / float(hw)
    inv_b = 1.0 / float(batch)
    n_chunks = tcol // acc_w
    last = n_tiles - 1
    rem_cols = hw - last * tcol            # valid columns in the last tile
    ragged = rem_cols != tcol

    def kernel(a_ref, b_ref, xs_ref, ys_ref, wf_ref, m_ref, o_ref,
               l1_acc, sx_acc, sy_acc):
        sel = pl.program_id(0)             # 0 = L1 pair, 1 = identity pair
        step = pl.program_id(1)

        @pl.when(step == 0)
        def _init():
            l1_acc[...] = jnp.zeros_like(l1_acc)
            sx_acc[...] = jnp.zeros_like(sx_acc)
            sy_acc[...] = jnp.zeros_like(sy_acc)

        def _col_mask(c):
            # valid-lane mask for column-chunk c of the LAST tile (c static)
            col = jax.lax.broadcasted_iota(jnp.int32, (bc, acc_w), 1) + c * acc_w
            return col < rem_cols

        # ---- streaming phase: fold tile into tiny fixed-width accumulators ----
        def _accum_l1(masked):
            def go():
                for c in range(n_chunks):
                    sl = slice(c * acc_w, (c + 1) * acc_w)   # static, 128-aligned
                    d = jnp.abs(a_ref[:, sl].astype(jnp.float32)
                                - b_ref[:, sl].astype(jnp.float32))
                    if masked:
                        d = jnp.where(_col_mask(c), d, 0.0)
                    l1_acc[...] += d
            return go

        def _accum_id(masked):
            def go():
                for c in range(n_chunks):
                    sl = slice(c * acc_w, (c + 1) * acc_w)
                    x = xs_ref[:, sl].astype(jnp.float32)
                    y = ys_ref[:, sl].astype(jnp.float32)
                    if masked:
                        msk = _col_mask(c)
                        x = jnp.where(msk, x, 0.0)
                        y = jnp.where(msk, y, 0.0)
                    sx_acc[...] += x
                    sy_acc[...] += y
            return go

        if ragged and n_tiles > 1:
            pl.when(jnp.logical_and(sel == 0, step < last))(_accum_l1(False))
            pl.when(jnp.logical_and(sel == 0, step == last))(_accum_l1(True))
            pl.when(jnp.logical_and(sel == 1, step < last))(_accum_id(False))
            pl.when(jnp.logical_and(sel == 1, step == last))(_accum_id(True))
        elif ragged:                          # single (ragged) tile
            pl.when(sel == 0)(_accum_l1(True))
            pl.when(sel == 1)(_accum_id(True))
        else:
            pl.when(sel == 0)(_accum_l1(False))
            pl.when(sel == 1)(_accum_id(False))

        # ---- finalize: one-time reductions, tiny matmuls, cosine, output ----
        @pl.when(jnp.logical_and(sel == 0, step == last))
        def _finalize_l1():
            l1 = jnp.sum(l1_acc[...]) * inv_n
            o_ref[...] = jnp.broadcast_to(l1, o_ref.shape).astype(jnp.float32)

        @pl.when(jnp.logical_and(sel == 1, step == last))
        def _finalize_id():
            px = jnp.sum(sx_acc[...], axis=-1, keepdims=True) * inv_hw   # (B*C, 1)
            py = jnp.sum(sy_acc[...], axis=-1, keepdims=True) * inv_hw   # (B*C, 1)
            wf = wf_ref[...]                                             # (B*C, F)
            m = m_ref[...]                                               # (B, B*C)
            # (B, B*C) @ (B*C, F) contracts the channel axis per batch element
            # without any in-kernel reshape of sub-tile arrays.
            fx = jnp.dot(m, px * wf, preferred_element_type=jnp.float32)  # (B, F)
            fy = jnp.dot(m, py * wf, preferred_element_type=jnp.float32)  # (B, F)
            dot_xy = jnp.sum(fx * fy, axis=-1, keepdims=True)             # (B, 1)
            nx = jnp.sqrt(jnp.sum(fx * fx, axis=-1, keepdims=True))
            ny = jnp.sqrt(jnp.sum(fy * fy, axis=-1, keepdims=True))
            cos = dot_xy / jnp.maximum(nx * ny, eps)
            id_loss = 1.0 - jnp.sum(cos) * inv_b
            o_ref[...] = jnp.broadcast_to(id_loss, o_ref.shape).astype(jnp.float32)

    return kernel


def dpe_loss(I_i, I_j, I_i_pose_j, I_j_pose_i, I_s, I_d, I_s_pose_d_dyn_d, w_feat,
             *, tile_bytes=4 * 1024 * 1024):
    # I_i, I_j, I_d are accepted but unused, exactly like the PyTorch forward.
    del I_i, I_j, I_d
    B, C, H, W = I_i_pose_j.shape
    Cw, F = w_feat.shape
    assert Cw == C
    BC = B * C
    HW = H * W
    n_total = B * C * H * W
    itemsize = jnp.dtype(I_i_pose_j.dtype).itemsize
    BC_pad = _round_up(BC, 8)

    # ---- tile sizing: big lane-dense column tiles, bounded by tile_bytes ----
    max_cols = max(LANE, (tile_bytes // (BC_pad * itemsize)) // LANE * LANE)
    TCOL = min(_round_up(HW, LANE), max_cols)
    if TCOL > ACC_W_BASE:
        TCOL = (TCOL // ACC_W_BASE) * ACC_W_BASE     # multiple of the fold width
        ACC_W = ACC_W_BASE
    else:
        ACC_W = TCOL                                  # single chunk per tile
    n_tiles = -(-HW // TCOL)

    # ---- free metadata-only reshapes: (B, C, H, W) -> (B*C, H*W), no pad ----
    a = I_i_pose_j.reshape(BC, HW)
    b = I_j_pose_i.reshape(BC, HW)
    xs = I_s.reshape(BC, HW)
    ys = I_s_pose_d_dyn_d.reshape(BC, HW)

    # Small resident operands for the finalize-only feature projection:
    #   w_full[b*C + c, :] = w_feat[c, :]   and   mask[b, r] = (r // C == b)
    w_full = jnp.tile(w_feat.astype(jnp.float32), (B, 1))               # (B*C, F)
    row_ids = jax.lax.broadcasted_iota(jnp.int32, (B, BC), 1)
    batch_ids = jax.lax.broadcasted_iota(jnp.int32, (B, BC), 0)
    mask = (row_ids // C == batch_ids).astype(jnp.float32)              # (B, B*C)

    # Stream-split index maps: the pair not owned by this `sel` pass is pinned
    # to block 0 (revisited block => a single DMA for the whole pass).
    stream_map_l1 = lambda s, i: (0, (1 - s) * i)
    stream_map_id = lambda s, i: (0, s * i)
    const_map = lambda s, i: (0, 0)

    kernel = _make_dpe_kernel(n_total=n_total, hw=HW, batch=B, bc=BC,
                              tcol=TCOL, acc_w=ACC_W, n_tiles=n_tiles,
                              eps=COS_EPS)

    # ---- explicit VMEM budget (double-buffered streams + scratch + residents) ----
    est_vmem = (2 * 4 * BC_pad * TCOL * itemsize                    # 4 streams x 2 bufs
                + 3 * BC_pad * _round_up(ACC_W, LANE) * 4           # accumulators
                + 2 * (BC_pad * _round_up(F, LANE)
                       + _round_up(B, 8) * _round_up(BC, LANE)) * 4  # residents
                + 2 * 2 * 8 * LANE * 4)                             # output blocks
    vmem_limit = int(min(48 << 20, max(16 << 20, est_vmem + (4 << 20))))

    cost = pl.CostEstimate(
        flops=int(6 * n_total + 4 * B * C * F),
        transcendentals=0,
        bytes_accessed=int(4 * n_total * itemsize))

    out = pl.pallas_call(
        kernel,
        out_shape=jax.ShapeDtypeStruct((2, 8, LANE), jnp.float32),
        grid=(2, n_tiles),
        in_specs=[
            pl.BlockSpec((BC, TCOL), stream_map_l1),    # I_i_pose_j column tiles
            pl.BlockSpec((BC, TCOL), stream_map_l1),    # I_j_pose_i column tiles
            pl.BlockSpec((BC, TCOL), stream_map_id),    # I_s column tiles
            pl.BlockSpec((BC, TCOL), stream_map_id),    # I_s_pose_d_dyn_d column tiles
            pl.BlockSpec((BC, F), const_map),           # tiled projection weights
            pl.BlockSpec((B, BC), const_map),           # batch-gather mask
        ],
        out_specs=pl.BlockSpec((1, 8, LANE), lambda s, i: (s, 0, 0)),
        scratch_shapes=[
            pltpu.VMEM((BC, ACC_W), jnp.float32),       # |a-b| partial sums
            pltpu.VMEM((BC, ACC_W), jnp.float32),       # I_s partial sums
            pltpu.VMEM((BC, ACC_W), jnp.float32),       # I_s_pose_d_dyn_d partial sums
        ],
        compiler_params=pltpu.CompilerParams(
            dimension_semantics=("parallel", "arbitrary"),
            vmem_limit_bytes=vmem_limit),
        cost_estimate=cost,
    )(a, b, xs, ys, w_full, mask)

    # out[0] holds pose_dyn_loss, out[1] holds identity_loss.
    return out[0, 0, 0] + out[1, 0, 0]


def _reference(I_i_pose_j, I_j_pose_i, I_s, I_s_pose_d_dyn_d, w_feat):
    l1 = jnp.mean(jnp.abs(I_i_pose_j - I_j_pose_i))
    B, C, H, W = I_s.shape
    px = jnp.mean(I_s.reshape(B, C, H * W), axis=-1)
    py = jnp.mean(I_s_pose_d_dyn_d.reshape(B, C, H * W), axis=-1)
    fx = px @ w_feat
    fy = py @ w_feat
    cos = jnp.sum(fx * fy, -1) / jnp.maximum(
        jnp.linalg.norm(fx, axis=-1) * jnp.linalg.norm(fy, axis=-1), COS_EPS)
    return l1 + (1.0 - jnp.mean(cos))


if __name__ == "__main__":
    key = jax.random.PRNGKey(0)

    # (shape, tile_bytes): single-tile, multi-step even, multi-step ragged tail.
    cases = [((2, 3, 16, 16), 4 * 1024 * 1024),
             ((2, 3, 128, 128), 64 * 1024),
             ((2, 3, 72, 72), 64 * 1024)]

    for (B, C, H, W), tb in cases:
        ks = jax.random.split(jax.random.fold_in(key, H * 1000 + W), 8)
        I_i = jax.random.normal(ks[0], (B, C, H, W), jnp.float32)
        I_j = jax.random.normal(ks[1], (B, C, H, W), jnp.float32)
        I_i_pose_j = jax.random.normal(ks[2], (B, C, H, W), jnp.float32)
        I_j_pose_i = jax.random.normal(ks[3], (B, C, H, W), jnp.float32)
        I_s = jax.random.normal(ks[4], (B, C, H, W), jnp.float32)
        I_d = jax.random.normal(ks[5], (B, C, H, W), jnp.float32)
        I_s_pose_d_dyn_d = jax.random.normal(ks[6], (B, C, H, W), jnp.float32)

        # deterministic stand-in "identity extractor" projection weights (C, F)
        w_feat = (jax.random.normal(ks[7], (C, FEAT_DIM), jnp.float32)
                  * (1.0 / np.sqrt(C))).astype(jnp.float32)

        loss = dpe_loss(I_i, I_j, I_i_pose_j, I_j_pose_i,
                        I_s, I_d, I_s_pose_d_dyn_d, w_feat, tile_bytes=tb)
        loss = jax.block_until_ready(loss)

        ref = _reference(I_i_pose_j, I_j_pose_i, I_s, I_s_pose_d_dyn_d, w_feat)
        np.testing.assert_allclose(np.asarray(loss), np.asarray(ref),
                                   rtol=1e-4, atol=1e-4)

    print("KERNEL_OK")
</pallas_src>

<mosaic_0001>
module attributes {stable_mosaic.version = 11 : i64} {
  func.func @kernel(%arg0: i32, %arg1: i32, %arg2: memref<6x256xf32, #tpu.memory_space<vmem>>, %arg3: memref<6x256xf32, #tpu.memory_space<vmem>>, %arg4: memref<6x256xf32, #tpu.memory_space<vmem>>, %arg5: memref<6x256xf32, #tpu.memory_space<vmem>>, %arg6: memref<6x64xf32, #tpu.memory_space<vmem>>, %arg7: memref<2x6xf32, #tpu.memory_space<vmem>>, %arg8: memref<1x8x128xf32, #tpu.memory_space<vmem>>, %arg9: memref<6x256xf32, #tpu.memory_space<vmem>>, %arg10: memref<6x256xf32, #tpu.memory_space<vmem>>, %arg11: memref<6x256xf32, #tpu.memory_space<vmem>>) attributes {dimension_semantics = [#tpu.dimension_semantics<parallel>, #tpu.dimension_semantics<arbitrary>], iteration_bounds = array<i64: 2, 1>, scalar_prefetch = 0 : i64, scratch_operands = 3 : i64, tpu.core_type = #tpu.core_type<tc>, window_params = [{transform_indices = @transform_0, window_bounds = array<i64: 6, 256>}, {transform_indices = @transform_1, window_bounds = array<i64: 6, 256>}, {transform_indices = @transform_2, window_bounds = array<i64: 6, 256>}, {transform_indices = @transform_3, window_bounds = array<i64: 6, 256>}, {pipeline_mode = #tpu.pipeline_mode<synchronous>, transform_indices = @transform_4, window_bounds = array<i64: 6, 64>}, {pipeline_mode = #tpu.pipeline_mode<synchronous>, transform_indices = @transform_5, window_bounds = array<i64: 2, 6>}, {transform_indices = @transform_6, window_bounds = array<i64: 1, 8, 128>}]} {
    %c0_i32 = arith.constant 0 : i32
    %0 = arith.cmpi eq, %arg1, %c0_i32 : i32
    %1 = arith.extui %0 : i1 to i32
    %c0_i32_0 = arith.constant 0 : i32
    %2 = arith.cmpi ne, %1, %c0_i32_0 : i32
    scf.if %2 {
      %cst = arith.constant 0.000000e+00 : f32
      %19 = vector.broadcast %cst : f32 to vector<6x256xf32>
      %c0 = arith.constant 0 : index
      %c0_10 = arith.constant 0 : index
      %20 = vector.load %arg9[%c0, %c0_10] : memref<6x256xf32, #tpu.memory_space<vmem>>, vector<6x256xf32>
      tpu.vector_store %arg9[%c0, %c0_10], %19 {strides = array<i32>} : memref<6x256xf32, #tpu.memory_space<vmem>>, vector<6x256xf32>,
      %cst_11 = arith.constant 0.000000e+00 : f32
      %21 = vector.broadcast %cst_11 : f32 to vector<6x256xf32>
      %c0_12 = arith.constant 0 : index
      %c0_13 = arith.constant 0 : index
      %22 = vector.load %arg10[%c0_12, %c0_13] : memref<6x256xf32, #tpu.memory_space<vmem>>, vector<6x256xf32>
      tpu.vector_store %arg10[%c0_12, %c0_13], %21 {strides = array<i32>} : memref<6x256xf32, #tpu.memory_space<vmem>>, vector<6x256xf32>,
      %cst_14 = arith.constant 0.000000e+00 : f32
      %23 = vector.broadcast %cst_14 : f32 to vector<6x256xf32>
      %c0_15 = arith.constant 0 : index
      %c0_16 = arith.constant 0 : index
      %24 = vector.load %arg11[%c0_15, %c0_16] : memref<6x256xf32, #tpu.memory_space<vmem>>, vector<6x256xf32>
      tpu.vector_store %arg11[%c0_15, %c0_16], %23 {strides = array<i32>} : memref<6x256xf32, #tpu.memory_space<vmem>>, vector<6x256xf32>,
    } else {
    }
    %c0_i32_1 = arith.constant 0 : i32
    %3 = arith.cmpi eq, %arg0, %c0_i32_1 : i32
    %4 = arith.extui %3 : i1 to i32
    %c0_i32_2 = arith.constant 0 : i32
    %5 = arith.cmpi ne, %4, %c0_i32_2 : i32
    scf.if %5 {
      %c0 = arith.constant 0 : index
      %c0_10 = arith.constant 0 : index
      %19 = vector.load %arg2[%c0, %c0_10] : memref<6x256xf32, #tpu.memory_space<vmem>>, vector<6x256xf32>
      %c0_11 = arith.constant 0 : index
      %c0_12 = arith.constant 0 : index
      %20 = vector.load %arg3[%c0_11, %c0_12] : memref<6x256xf32, #tpu.memory_space<vmem>>, vector<6x256xf32>
      %21 = arith.subf %19, %20 : vector<6x256xf32>
      %22 = math.absf %21 : vector<6x256xf32>
      %c0_13 = arith.constant 0 : index
      %c0_14 = arith.constant 0 : index
      %23 = vector.load %arg9[%c0_13, %c0_14] : memref<6x256xf32, #tpu.memory_space<vmem>>, vector<6x256xf32>
      %24 = arith.addf %23, %22 : vector<6x256xf32>
      %c0_15 = arith.constant 0 : index
      %c0_16 = arith.constant 0 : index
      %25 = vector.load %arg9[%c0_15, %c0_16] : memref<6x256xf32, #tpu.memory_space<vmem>>, vector<6x256xf32>
      tpu.vector_store %arg9[%c0_15, %c0_16], %24 {strides = array<i32>} : memref<6x256xf32, #tpu.memory_space<vmem>>, vector<6x256xf32>,
    } else {
    }
    %c1_i32 = arith.constant 1 : i32
    %6 = arith.cmpi eq, %arg0, %c1_i32 : i32
    %7 = arith.extui %6 : i1 to i32
    %c0_i32_3 = arith.constant 0 : i32
    %8 = arith.cmpi ne, %7, %c0_i32_3 : i32
    scf.if %8 {
      %c0 = arith.constant 0 : index
      %c0_10 = arith.constant 0 : index
      %19 = vector.load %arg4[%c0, %c0_10] : memref<6x256xf32, #tpu.memory_space<vmem>>, vector<6x256xf32>
      %c0_11 = arith.constant 0 : index
      %c0_12 = arith.constant 0 : index
      %20 = vector.load %arg5[%c0_11, %c0_12] : memref<6x256xf32, #tpu.memory_space<vmem>>, vector<6x256xf32>
      %c0_13 = arith.constant 0 : index
      %c0_14 = arith.constant 0 : index
      %21 = vector.load %arg10[%c0_13, %c0_14] : memref<6x256xf32, #tpu.memory_space<vmem>>, vector<6x256xf32>
      %22 = arith.addf %21, %19 : vector<6x256xf32>
      %c0_15 = arith.constant 0 : index
      %c0_16 = arith.constant 0 : index
      %23 = vector.load %arg10[%c0_15, %c0_16] : memref<6x256xf32, #tpu.memory_space<vmem>>, vector<6x256xf32>
      tpu.vector_store %arg10[%c0_15, %c0_16], %22 {strides = array<i32>} : memref<6x256xf32, #tpu.memory_space<vmem>>, vector<6x256xf32>,
      %c0_17 = arith.constant 0 : index
      %c0_18 = arith.constant 0 : index
      %24 = vector.load %arg11[%c0_17, %c0_18] : memref<6x256xf32, #tpu.memory_space<vmem>>, vector<6x256xf32>
      %25 = arith.addf %24, %20 : vector<6x256xf32>
      %c0_19 = arith.constant 0 : index
      %c0_20 = arith.constant 0 : index
      %26 = vector.load %arg11[%c0_19, %c0_20] : memref<6x256xf32, #tpu.memory_space<vmem>>, vector<6x256xf32>
      tpu.vector_store %arg11[%c0_19, %c0_20], %25 {strides = array<i32>} : memref<6x256xf32, #tpu.memory_space<vmem>>, vector<6x256xf32>,
    } else {
    }
    %c0_i32_4 = arith.constant 0 : i32
    %9 = arith.cmpi eq, %arg0, %c0_i32_4 : i32
    %c0_i32_5 = arith.constant 0 : i32
    %10 = arith.cmpi eq, %arg1, %c0_i32_5 : i32
    %11 = arith.andi %9, %10 : i1
    %12 = arith.extui %11 : i1 to i32
    %c0_i32_6 = arith.constant 0 : i32
    %13 = arith.cmpi ne, %12, %c0_i32_6 : i32
    scf.if %13 {
      %c0 = arith.constant 0 : index
      %c0_10 = arith.constant 0 : index
      %19 = vector.load %arg9[%c0, %c0_10] : memref<6x256xf32, #tpu.memory_space<vmem>>, vector<6x256xf32>
      %20 = vector.shape_cast %19 : vector<6x256xf32> to vector<1x6x256xf32>
      %cst = arith.constant dense<0.000000e+00> : vector<1xf32>
      %21 = vector.multi_reduction <add>, %20, %cst [1, 2] : vector<1x6x256xf32> to vector<1xf32>
      %22 = vector.shape_cast %21 : vector<1xf32> to vector<1x1x1xf32>
      %23 = vector.extract %22[0, 0, 0] : f32 from vector<1x1x1xf32>
      %cst_11 = arith.constant 6.51041686E-4 : f32
      %24 = arith.mulf %23, %cst_11 : f32
      %25 = vector.broadcast %24 : f32 to vector<1x8x128xf32>
      %c0_12 = arith.constant 0 : index
      %c0_13 = arith.constant 0 : index
      %c0_14 = arith.constant 0 : index
      %26 = vector.load %arg8[%c0_12, %c0_13, %c0_14] : memref<1x8x128xf32, #tpu.memory_space<vmem>>, vector<1x8x128xf32>
      tpu.vector_store %arg8[%c0_12, %c0_13, %c0_14], %25 {strides = array<i32>} : memref<1x8x128xf32, #tpu.memory_space<vmem>>, vector<1x8x128xf32>,
    } else {
    }
    %c1_i32_7 = arith.constant 1 : i32
    %14 = arith.cmpi eq, %arg0, %c1_i32_7 : i32
    %c0_i32_8 = arith.constant 0 : i32
    %15 = arith.cmpi eq, %arg1, %c0_i32_8 : i32
    %16 = arith.andi %14, %15 : i1
    %17 = arith.extui %16 : i1 to i32
    %c0_i32_9 = arith.constant 0 : i32
    %18 = arith.cmpi ne, %17, %c0_i32_9 : i32
    scf.if %18 {
      %c0 = arith.constant 0 : index
      %c0_10 = arith.constant 0 : index
      %19 = vector.load %arg10[%c0, %c0_10] : memref<6x256xf32, #tpu.memory_space<vmem>>, vector<6x256xf32>
      %cst = arith.constant dense<0.000000e+00> : vector<6xf32>
      %20 = vector.multi_reduction <add>, %19, %cst [1] : vector<6x256xf32> to vector<6xf32>
      %21 = vector.shape_cast %20 : vector<6xf32> to vector<6x1xf32>
      %cst_11 = arith.constant 3.906250e-03 : f32
      %22 = vector.broadcast %cst_11 : f32 to vector<6x1xf32>
      %23 = arith.mulf %21, %22 : vector<6x1xf32>
      %c0_12 = arith.constant 0 : index
      %c0_13 = arith.constant 0 : index
      %24 = vector.load %arg11[%c0_12, %c0_13] : memref<6x256xf32, #tpu.memory_space<vmem>>, vector<6x256xf32>
      %cst_14 = arith.constant dense<0.000000e+00> : vector<6xf32>
      %25 = vector.multi_reduction <add>, %24, %cst_14 [1] : vector<6x256xf32> to vector<6xf32>
      %26 = vector.shape_cast %25 : vector<6xf32> to vector<6x1xf32>
      %cst_15 = arith.constant 3.906250e-03 : f32
      %27 = vector.broadcast %cst_15 : f32 to vector<6x1xf32>
      %28 = arith.mulf %26, %27 : vector<6x1xf32>
      %c0_16 = arith.constant 0 : index
      %c0_17 = arith.constant 0 : index
      %29 = vector.load %arg6[%c0_16, %c0_17] : memref<6x64xf32, #tpu.memory_space<vmem>>, vector<6x64xf32>
      %c0_18 = arith.constant 0 : index
      %c0_19 = arith.constant 0 : index
      %30 = vector.load %arg7[%c0_18, %c0_19] : memref<2x6xf32, #tpu.memory_space<vmem>>, vector<2x6xf32>
      %31 = vector.broadcast %23 : vector<6x1xf32> to vector<6x64xf32>
      %32 = arith.mulf %31, %29 : vector<6x64xf32>
      %cst_20 = arith.constant dense<0.000000e+00> : vector<2x64xf32>
      %33 = tpu.matmul %30, %32, %cst_20 {dimension_numbers = #tpu.dot_dimension_numbers<[1], [0], [0], [1], [0, 0, 1, 1], [], []>} : vector<2x6xf32>, vector<6x64xf32>, vector<2x64xf32> -> vector<2x64xf32>
      %34 = vector.broadcast %28 : vector<6x1xf32> to vector<6x64xf32>
      %35 = arith.mulf %34, %29 : vector<6x64xf32>
      %cst_21 = arith.constant dense<0.000000e+00> : vector<2x64xf32>
      %36 = tpu.matmul %30, %35, %cst_21 {dimension_numbers = #tpu.dot_dimension_numbers<[1], [0], [0], [1], [0, 0, 1, 1], [], []>} : vector<2x6xf32>, vector<6x64xf32>, vector<2x64xf32> -> vector<2x64xf32>
      %37 = arith.mulf %33, %36 : vector<2x64xf32>
      %cst_22 = arith.constant dense<0.000000e+00> : vector<2xf32>
      %38 = vector.multi_reduction <add>, %37, %cst_22 [1] : vector<2x64xf32> to vector<2xf32>
      %39 = vector.shape_cast %38 : vector<2xf32> to vector<2x1xf32>
      %40 = arith.mulf %33, %33 : vector<2x64xf32>
      %cst_23 = arith.constant dense<0.000000e+00> : vector<2xf32>
      %41 = vector.multi_reduction <add>, %40, %cst_23 [1] : vector<2x64xf32> to vector<2xf32>
      %42 = vector.shape_cast %41 : vector<2xf32> to vector<2x1xf32>
      %43 = math.sqrt %42 : vector<2x1xf32>
      %44 = arith.mulf %36, %36 : vector<2x64xf32>
      %cst_24 = arith.constant dense<0.000000e+00> : vector<2xf32>
      %45 = vector.multi_reduction <add>, %44, %cst_24 [1] : vector<2x64xf32> to vector<2xf32>
      %46 = vector.shape_cast %45 : vector<2xf32> to vector<2x1xf32>
      %47 = math.sqrt %46 : vector<2x1xf32>
      %48 = arith.mulf %43, %47 : vector<2x1xf32>
      %cst_25 = arith.constant 9.99999993E-9 : f32
      %49 = vector.broadcast %cst_25 : f32 to vector<2x1xf32>
      %50 = arith.maximumf %48, %49 : vector<2x1xf32>
      %51 = arith.divf %39, %50 : vector<2x1xf32>
      %52 = vector.shape_cast %51 : vector<2x1xf32> to vector<1x2x1xf32>
      %cst_26 = arith.constant dense<0.000000e+00> : vector<1xf32>
      %53 = vector.multi_reduction <add>, %52, %cst_26 [1, 2] : vector<1x2x1xf32> to vector<1xf32>
      %54 = vector.shape_cast %53 : vector<1xf32> to vector<1x1x1xf32>
      %55 = vector.extract %54[0, 0, 0] : f32 from vector<1x1x1xf32>
      %cst_27 = arith.constant 5.000000e-01 : f32
      %56 = arith.mulf %55, %cst_27 : f32
      %cst_28 = arith.constant 1.000000e+00 : f32
      %57 = arith.subf %cst_28, %56 : f32
      %58 = vector.broadcast %57 : f32 to vector<1x8x128xf32>
      %c0_29 = arith.constant 0 : index
      %c0_30 = arith.constant 0 : index
      %c0_31 = arith.constant 0 : index
      %59 = vector.load %arg8[%c0_29, %c0_30, %c0_31] : memref<1x8x128xf32, #tpu.memory_space<vmem>>, vector<1x8x128xf32>
      tpu.vector_store %arg8[%c0_29, %c0_30, %c0_31], %58 {strides = array<i32>} : memref<1x8x128xf32, #tpu.memory_space<vmem>>, vector<1x8x128xf32>,
    } else {
    }
    return
  }
  func.func @transform_0(%arg0: i32, %arg1: i32) -> (i32, i32) {
    %c1_i32 = arith.constant 1 : i32
    %0 = arith.subi %c1_i32, %arg0 : i32
    %1 = arith.muli %0, %arg1 : i32
    %c0_i32 = arith.constant 0 : i32
    %c0_i32_0 = arith.constant 0 : i32
    return %c0_i32, %1 : i32, i32
  }
  func.func @transform_1(%arg0: i32, %arg1: i32) -> (i32, i32) {
    %c1_i32 = arith.constant 1 : i32
    %0 = arith.subi %c1_i32, %arg0 : i32
    %1 = arith.muli %0, %arg1 : i32
    %c0_i32 = arith.constant 0 : i32
    %c0_i32_0 = arith.constant 0 : i32
    return %c0_i32, %1 : i32, i32
  }
  func.func @transform_2(%arg0: i32, %arg1: i32) -> (i32, i32) {
    %0 = arith.muli %arg0, %arg1 : i32
    %c0_i32 = arith.constant 0 : i32
    %c0_i32_0 = arith.constant 0 : i32
    return %c0_i32, %0 : i32, i32
  }
  func.func @transform_3(%arg0: i32, %arg1: i32) -> (i32, i32) {
    %0 = arith.muli %arg0, %arg1 : i32
    %c0_i32 = arith.constant 0 : i32
    %c0_i32_0 = arith.constant 0 : i32
    return %c0_i32, %0 : i32, i32
  }
  func.func @transform_4(%arg0: i32, %arg1: i32) -> (i32, i32) {
    %c0_i32 = arith.constant 0 : i32
    %c0_i32_0 = arith.constant 0 : i32
    %c0_i32_1 = arith.constant 0 : i32
    return %c0_i32, %c0_i32_0 : i32, i32
  }
  func.func @transform_5(%arg0: i32, %arg1: i32) -> (i32, i32) {
    %c0_i32 = arith.constant 0 : i32
    %c0_i32_0 = arith.constant 0 : i32
    %c0_i32_1 = arith.constant 0 : i32
    return %c0_i32, %c0_i32_0 : i32, i32
  }
  func.func @transform_6(%arg0: i32, %arg1: i32) -> (i32, i32, i32) {
    %c0_i32 = arith.constant 0 : i32
    %c0_i32_0 = arith.constant 0 : i32
    %c0_i32_1 = arith.constant 0 : i32
    return %arg0, %c0_i32, %c0_i32_0 : i32, i32, i32
  }
}

</mosaic_0001>

<llo_original>
// kernel: tpu_custom_call.1
$region0: #{tpu_custom_call.1}
  #allocation0 [shape = 'u32[]', space=smem, size = 0x4, offset = 0x4, fixed_abs, tag = 'smem constant byte address 0x4 - core index']
  #allocation1 [shape = 'u32[144,128]{1,0:T(1,128)}', space=vmem, size = 0x12000, scoped, tag = 'internal scratch']
  #allocation2 [shape = 'f32[6,256]{1,0:T(8,128)}', space=vmem, size = 0x2000, scoped, tag = 'scratch operand']
  #allocation3 [shape = 'f32[6,256]{1,0:T(8,128)}', space=vmem, size = 0x2000, scoped, tag = 'scratch operand']
  #allocation4 [shape = 'f32[6,256]{1,0:T(8,128)}', space=vmem, size = 0x2000, scoped, tag = 'scratch operand']
  %s0 = inlined_call_operand.hbm [shape: f32[6,256], index: 0, kind: input, shape index: {}]
  %s1 = inlined_call_operand.hbm [shape: f32[6,256], index: 1, kind: input, shape index: {}]
  %s2 = inlined_call_operand.hbm [shape: f32[6,256], index: 2, kind: input, shape index: {}]
  %s3 = inlined_call_operand.hbm [shape: f32[6,256], index: 3, kind: input, shape index: {}]
  %s4 = inlined_call_operand.vmem [shape: f32[6,64], index: 4, kind: input, shape index: {}]
  %s5 = inlined_call_operand.vmem [shape: f32[2,6], index: 5, kind: input, shape index: {}]
  %s6 = inlined_call_operand.hbm [shape: f32[2,8,128], index: 6, kind: output, shape index: {}]
  %s7 = sld [smem:[#allocation0]]
  $region93: #{tpu_custom_call.1} parent=0
    _
  %s9 = ssub.s32 1, %s7
  %s10 = scalar_select 0, %s9, %s7
  $region1: #{tpu_custom_call.1} parent=0
    #allocation5 [shape = 'u8[16384]{0}', space=vmem, size = 0x4000, scoped, tag = 'input window, operand 0']
    #allocation6 [shape = 's32[2]{0}', space=sflag, size = 0x8, scoped, tag = 'scoped memory for tpu_custom_call.1']
    #allocation7 [shape = 's32[2]{0}', space=sflag, size = 0x8, scoped, tag = 'scoped memory for tpu_custom_call.1']
    #allocation8 [shape = 'u8[16384]{0}', space=vmem, size = 0x4000, scoped, tag = 'input window, operand 1']
    #allocation9 [shape = 's32[2]{0}', space=sflag, size = 0x8, scoped, tag = 'scoped memory for tpu_custom_call.1']
    #allocation10 [shape = 'u8[16384]{0}', space=vmem, size = 0x4000, scoped, tag = 'input window, operand 2']
    #allocation11 [shape = 'u8[16384]{0}', space=vmem, size = 0x4000, scoped, tag = 'input window, operand 3']
    #allocation12 [shape = 's32[2]{0}', space=sflag, size = 0x8, scoped, tag = 'scoped memory for tpu_custom_call.1']
    #allocation13 [shape = 'u8[8192]{0}', space=vmem, size = 0x2000, scoped, tag = 'output window, operand 0']
    %11 = vsyncpa [#allocation6], 0
    %s12 = scalar_lea.sflag [#allocation6], 1
    %13 = vsyncpa %s12, 0
    %14 = vsyncpa [#allocation9], 0
    %s15 = scalar_lea.sflag [#allocation9], 1
    %16 = vsyncpa %s15, 0
    %17 = vsyncpa [#allocation12], 0
    %s18 = scalar_lea.sflag [#allocation12], 1
    %19 = vsyncpa %s18, 0
    %20 = vsyncpa [#allocation7], 0
    %s21 = scalar_lea.sflag [#allocation7], 1
    %22 = vsyncpa %s21, 0
    loop: start=0, step=1, limit=4
    $region2: #{tpu_custom_call.1} parent=1 // loop_pre_header
      _
    $region3: #{tpu_custom_call.1} parent=1 // loop_header
      %s24 = sphi 0, %s28
      %p25 = scmp.ge.s32.totalorder %s24, 4
      %s31 = sphi 0, %s43
      %s32 = sphi 0, %s39
      %s33 = sphi 0, %s31
      %s34 = sphi 0, %s32
      %s35 = sphi 0, %s33
      %s36 = sphi 0, %s34
      %s50 = sphi 0, %s52
      %s53 = sphi 0, %s50
      %s54 = sphi 0, %s53
      %s70 = sphi 0, %s54
      %s80 = sphi 0, %s82
      %s83 = sphi 0, %s80
      %s84 = sphi 0, %s83
      %s100 = sphi 0, %s84
      %s108 = sphi 0, %s110
      %s111 = sphi 0, %s108
      %s112 = sphi 0, %s111
      %s128 = sphi 0, %s112
      %s136 = sphi 0, %s138
      %s139 = sphi 0, %s136
      %s140 = sphi 0, %s139
      %s156 = sphi 0, %s140
      %s160 = sphi 0, %s160
      %s162 = sphi 0, %s160
      %s163 = sphi 0, %s162
      %s177 = sphi 0, %s163
      %s181 = sphi 0, %s181
      %s183 = sphi 0, %s181
      %s184 = sphi 0, %s183
      %s198 = sphi 0, %s184
      %s204 = sphi 0, %s206
      %s207 = sphi 0, %s204
      %s208 = sphi 0, %s207
      %s224 = sphi 0, %s208
    $region4: #{tpu_custom_call.1} parent=1 // loop_header_branch
      %27 = sbr.rel (%p25) target = $region8
    $region5: #{tpu_custom_call.1} parent=1 // loop_body
      %s29 = ssub.s32 %s24, 1
      %s30 = ssub.s32 %s24, 2
      %s37 = sadd.s32 1, %s32
      %p38 = scmp.ge.s32.totalorder %s37, 1
      %s39 = scalar_select %p38, 0, %s37
      %s40 = sadd.s32 1, %s31
      %s41 = scalar_select %p38, %s40, %s31
      %p42 = scmp.ge.s32.totalorder %s41, 2
      %s43 = scalar_select %p42, 0, %s41
      %s44 = ssub.s32 1, %s31
      %s45 = smul.u32 %s44, %s32
      %s46 = ssub.s32 1, %s43
      %s47 = smul.u32 %s46, %s39
      %s48 = ssub.s32 %s45, %s47
      %p49 = scmp.eq.s32.totalorder %s48, 0
      %s51 = sadd.s32 %s50, 1
      %s52 = scalar_select %p49, %s50, %s51
      %p55 = pneg %p49
      %p56 = scmp.eq.s32.totalorder %s24, 1
      %p57 = por %p55, %p56
      %p58 = scmp.ne.s32.totalorder %s50, %s53
      %p59 = scmp.eq.s32.totalorder %s24, 0
      %p60 = por %p58, %p59
      %p61 = scmp.ne.s32.totalorder %s50, %s53
      %p62 = scmp.eq.s32.totalorder %s29, 1
      %p63 = por %p61, %p62
      %p64 = scmp.ne.s32.totalorder %s53, %s54
      %p65 = scmp.eq.s32.totalorder %s29, 0
      %p66 = por %p64, %p65
      %p67 = scmp.ne.s32.totalorder %s53, %s54
      %p68 = scmp.eq.s32.totalorder %s30, 1
      %p69 = por %p67, %p68
      %p71 = scmp.ne.s32.totalorder %s54, %s70
      %p72 = scmp.eq.s32.totalorder %s30, 0
      %p73 = por %p71, %p72
      %s74 = ssub.s32 1, %s31
      %s75 = smul.u32 %s74, %s32
      %s76 = ssub.s32 1, %s43
      %s77 = smul.u32 %s76, %s39
      %s78 = ssub.s32 %s75, %s77
      %p79 = scmp.eq.s32.totalorder %s78, 0
      %s81 = sadd.s32 %s80, 1
      %s82 = scalar_select %p79, %s80, %s81
      %p85 = pneg %p79
      %p86 = scmp.eq.s32.totalorder %s24, 1
      %p87 = por %p85, %p86
      %p88 = scmp.ne.s32.totalorder %s80, %s83
      %p89 = scmp.eq.s32.totalorder %s24, 0
      %p90 = por %p88, %p89
      %p91 = scmp.ne.s32.totalorder %s80, %s83
      %p92 = scmp.eq.s32.totalorder %s29, 1
      %p93 = por %p91, %p92
      %p94 = scmp.ne.s32.totalorder %s83, %s84
      %p95 = scmp.eq.s32.totalorder %s29, 0
      %p96 = por %p94, %p95
      %p97 = scmp.ne.s32.totalorder %s83, %s84
      %p98 = scmp.eq.s32.totalorder %s30, 1
      %p99 = por %p97, %p98
      %p101 = scmp.ne.s32.totalorder %s84, %s100
      %p102 = scmp.eq.s32.totalorder %s30, 0
      %p103 = por %p101, %p102
      %s104 = smul.u32 %s31, %s32
      %s105 = smul.u32 %s43, %s39
      %s106 = ssub.s32 %s104, %s105
      %p107 = scmp.eq.s32.totalorder %s106, 0
      %s109 = sadd.s32 %s108, 1
      %s110 = scalar_select %p107, %s108, %s109
      %p113 = pneg %p107
      %p114 = scmp.eq.s32.totalorder %s24, 1
      %p115 = por %p113, %p114
      %p116 = scmp.ne.s32.totalorder %s108, %s111
      %p117 = scmp.eq.s32.totalorder %s24, 0
      %p118 = por %p116, %p117
      %p119 = scmp.ne.s32.totalorder %s108, %s111
      %p120 = scmp.eq.s32.totalorder %s29, 1
      %p121 = por %p119, %p120
      %p122 = scmp.ne.s32.totalorder %s111, %s112
      %p123 = scmp.eq.s32.totalorder %s29, 0
      %p124 = por %p122, %p123
      %p125 = scmp.ne.s32.totalorder %s111, %s112
      %p126 = scmp.eq.s32.totalorder %s30, 1
      %p127 = por %p125, %p126
      %p129 = scmp.ne.s32.totalorder %s112, %s128
      %p130 = scmp.eq.s32.totalorder %s30, 0
      %p131 = por %p129, %p130
      %s132 = smul.u32 %s31, %s32
      %s133 = smul.u32 %s43, %s39
      %s134 = ssub.s32 %s132, %s133
      %p135 = scmp.eq.s32.totalorder %s134, 0
      %s137 = sadd.s32 %s136, 1
      %s138 = scalar_select %p135, %s136, %s137
      %p141 = pneg %p135
      %p142 = scmp.eq.s32.totalorder %s24, 1
      %p143 = por %p141, %p142
      %p144 = scmp.ne.s32.totalorder %s136, %s139
      %p145 = scmp.eq.s32.totalorder %s24, 0
      %p146 = por %p144, %p145
      %p147 = scmp.ne.s32.totalorder %s136, %s139
      %p148 = scmp.eq.s32.totalorder %s29, 1
      %p149 = por %p147, %p148
      %p150 = scmp.ne.s32.totalorder %s139, %s140
      %p151 = scmp.eq.s32.totalorder %s29, 0
      %p152 = por %p150, %p151
      %p153 = scmp.ne.s32.totalorder %s139, %s140
      %p154 = scmp.eq.s32.totalorder %s30, 1
      %p155 = por %p153, %p154
      %p157 = scmp.ne.s32.totalorder %s140, %s156
      %p158 = scmp.eq.s32.totalorder %s30, 0
      %p159 = por %p157, %p158
      %s161 = sadd.s32 %s160, 1
      %p164 = scmp.eq.s32.totalorder %s24, 1
      %p165 = scmp.ne.s32.totalorder %s160, %s162
      %p166 = scmp.eq.s32.totalorder %s24, 0
      %p167 = por %p165, %p166
      %p168 = scmp.ne.s32.totalorder %s160, %s162
      %p169 = scmp.eq.s32.totalorder %s29, 1
      %p170 = por %p168, %p169
      %p171 = scmp.ne.s32.totalorder %s162, %s163
      %p172 = scmp.eq.s32.totalorder %s29, 0
      %p173 = por %p171, %p172
      %p174 = scmp.ne.s32.totalorder %s162, %s163
      %p175 = scmp.eq.s32.totalorder %s30, 1
      %p176 = por %p174, %p175
      %p178 = scmp.ne.s32.totalorder %s163, %s177
      %p179 = scmp.eq.s32.totalorder %s30, 0
      %p180 = por %p178, %p179
      %s182 = sadd.s32 %s181, 1
      %p185 = scmp.eq.s32.totalorder %s24, 1
      %p186 = scmp.ne.s32.totalorder %s181, %s183
      %p187 = scmp.eq.s32.totalorder %s24, 0
      %p188 = por %p186, %p187
      %p189 = scmp.ne.s32.totalorder %s181, %s183
      %p190 = scmp.eq.s32.totalorder %s29, 1
      %p191 = por %p189, %p190
      %p192 = scmp.ne.s32.totalorder %s183, %s184
      %p193 = scmp.eq.s32.totalorder %s29, 0
      %p194 = por %p192, %p193
      %p195 = scmp.ne.s32.totalorder %s183, %s184
      %p196 = scmp.eq.s32.totalorder %s30, 1
      %p197 = por %p195, %p196
      %p199 = scmp.ne.s32.totalorder %s184, %s198
      %p200 = scmp.eq.s32.totalorder %s30, 0
      %p201 = por %p199, %p200
      %s202 = ssub.s32 %s31, %s43
      %p203 = scmp.eq.s32.totalorder %s202, 0
      %s205 = sadd.s32 %s204, 1
      %s206 = scalar_select %p203, %s204, %s205
      %p209 = pneg %p203
      %p210 = scmp.eq.s32.totalorder %s24, 1
      %p211 = por %p209, %p210
      %p212 = scmp.ne.s32.totalorder %s204, %s207
      %p213 = scmp.eq.s32.totalorder %s24, 0
      %p214 = por %p212, %p213
      %p215 = scmp.ne.s32.totalorder %s204, %s207
      %p216 = scmp.eq.s32.totalorder %s29, 1
      %p217 = por %p215, %p216
      %p218 = scmp.ne.s32.totalorder %s207, %s208
      %p219 = scmp.eq.s32.totalorder %s29, 0
      %p220 = por %p218, %p219
      %p221 = scmp.ne.s32.totalorder %s207, %s208
      %p222 = scmp.eq.s32.totalorder %s30, 1
      %p223 = por %p221, %p222
      %p225 = scmp.ne.s32.totalorder %s208, %s224
      %p226 = scmp.eq.s32.totalorder %s30, 0
      %p227 = por %p225, %p226
      %p228 = scmp.le.s32.totalorder 1, %s24
      %p229 = scmp.lt.s32.totalorder %s24, 3
      %p230 = pnand %p228, %p229
      %p231 = pneg %p230
      // Predicated region
      $region9: #{tpu_custom_call.1} parent=5 // pred_check
        _
      $region10: #{tpu_custom_call.1} parent=5 // pred_check_branch
        %233 = sbr.rel (%p230) target = $region12
      $region11: #{tpu_custom_call.1} parent=5 // pred_region
        %s234 = ssub.s32 %s24, 1
        // Predicated region
        $region13: #{tpu_custom_call.1} parent=11 // pred_check
          %p235 = pneg %p173
        $region14: #{tpu_custom_call.1} parent=11 // pred_check_branch
          %237 = sbr.rel (%p235) target = $region16
        $region15: #{tpu_custom_call.1} parent=11 // pred_region
          _
        $region16: #{tpu_custom_call.1} parent=11 // pred_fallthru
          _
        // Predicated region
        $region17: #{tpu_custom_call.1} parent=11 // pred_check
          %p238 = pneg %p194
        $region18: #{tpu_custom_call.1} parent=11 // pred_check_branch
          %240 = sbr.rel (%p238) target = $region20
        $region19: #{tpu_custom_call.1} parent=11 // pred_region
          _
        $region20: #{tpu_custom_call.1} parent=11 // pred_fallthru
          _
      $region12: #{tpu_custom_call.1} parent=5 // pred_fallthru
        _
      %p241 = scmp.lt.s32.totalorder %s24, 2
      // Predicated region
      $region21: #{tpu_custom_call.1} parent=5 // pred_check
        %p242 = pneg %p241
      $region22: #{tpu_custom_call.1} parent=5 // pred_check_branch
        %244 = sbr.rel (%p242) target = $region24
      $region23: #{tpu_custom_call.1} parent=5 // pred_region
        // Predicated region
        $region25: #{tpu_custom_call.1} parent=23 // pred_check
          %p245 = pneg %p60
        $region26: #{tpu_custom_call.1} parent=23 // pred_check_branch
          %247 = sbr.rel (%p245) target = $region28
        $region27: #{tpu_custom_call.1} parent=23 // pred_region
          %s248 = sand.u32 %s50, 1
          %s249 = scalar_lea.sflag [#allocation6], %s248
          %s250 = sand.u32 %s50, 1
          %s251 = smul.addr %s250, 16
          %s252 = scalar_lea.vmem [#allocation5], %s251
          %s253 = ssub.s32 1, %s31
          %s254 = smul.u32 %s253, %s32
          %s255 = smul.u32 2, %s254
          %s257 = ssub.s32 256, 256
          %258 = vsyncadd %s249, %s257
          %s259 = smul.addr %s255, 128
          %s260 = scalar_lea.hbm %s0, %s259
          %s262 = sshll.u32 %s252, 4
          %s263 = int_to_ptr.vmem [resolvable:$true] %s262
          %265 = dma.hbm_to_vmem [thread:$0]  %s260, 256, %s263, %s249
        $region28: #{tpu_custom_call.1} parent=23 // pred_fallthru
          _
        // Predicated region
        $region29: #{tpu_custom_call.1} parent=23 // pred_check
          %p266 = pneg %p90
        $region30: #{tpu_custom_call.1} parent=23 // pred_check_branch
          %268 = sbr.rel (%p266) target = $region32
        $region31: #{tpu_custom_call.1} parent=23 // pred_region
          %s269 = sand.u32 %s24, 1
          %s270 = scalar_lea.sflag [#allocation9], %s269
          %s271 = sand.u32 %s80, 1
          %s272 = smul.addr %s271, 16
          %s273 = scalar_lea.vmem [#allocation8], %s272
          %s274 = ssub.s32 1, %s31
          %s275 = smul.u32 %s274, %s32
          %s276 = smul.u32 2, %s275
          %s278 = ssub.s32 256, 256
          %279 = vsyncadd %s270, %s278
          %s280 = smul.addr %s276, 128
          %s281 = scalar_lea.hbm %s1, %s280
          %s283 = sshll.u32 %s273, 4
          %s284 = int_to_ptr.vmem [resolvable:$true] %s283
          %286 = dma.hbm_to_vmem [thread:$0]  %s281, 256, %s284, %s270
        $region32: #{tpu_custom_call.1} parent=23 // pred_fallthru
          _
        // Predicated region
        $region33: #{tpu_custom_call.1} parent=23 // pred_check
          %p287 = pneg %p118
        $region34: #{tpu_custom_call.1} parent=23 // pred_check_branch
          %289 = sbr.rel (%p287) target = $region36
        $region35: #{tpu_custom_call.1} parent=23 // pred_region
          %s290 = sand.u32 %s24, 1
          %s291 = scalar_lea.sflag [#allocation9], %s290
          %s292 = sand.u32 %s108, 1
          %s293 = smul.addr %s292, 16
          %s294 = scalar_lea.vmem [#allocation10], %s293
          %s295 = smul.u32 %s31, %s32
          %s296 = smul.u32 2, %s295
          %s298 = ssub.s32 256, 256
          %299 = vsyncadd %s291, %s298
          %s300 = smul.addr %s296, 128
          %s301 = scalar_lea.hbm %s2, %s300
          %s303 = sshll.u32 %s294, 4
          %s304 = int_to_ptr.vmem [resolvable:$true] %s303
          %306 = dma.hbm_to_vmem [thread:$0]  %s301, 256, %s304, %s291
        $region36: #{tpu_custom_call.1} parent=23 // pred_fallthru
          _
        // Predicated region
        $region37: #{tpu_custom_call.1} parent=23 // pred_check
          %p307 = pneg %p146
        $region38: #{tpu_custom_call.1} parent=23 // pred_check_branch
          %309 = sbr.rel (%p307) target = $region40
        $region39: #{tpu_custom_call.1} parent=23 // pred_region
          %s310 = sand.u32 %s136, 1
          %s311 = scalar_lea.sflag [#allocation12], %s310
          %s312 = sand.u32 %s136, 1
          %s313 = smul.addr %s312, 16
          %s314 = scalar_lea.vmem [#allocation11], %s313
          %s315 = smul.u32 %s31, %s32
          %s316 = smul.u32 2, %s315
          %s318 = ssub.s32 256, 256
          %319 = vsyncadd %s311, %s318
          %s320 = smul.addr %s316, 128
          %s321 = scalar_lea.hbm %s3, %s320
          %s323 = sshll.u32 %s314, 4
          %s324 = int_to_ptr.vmem [resolvable:$true] %s323
          %326 = dma.hbm_to_vmem [thread:$0]  %s321, 256, %s324, %s311
        $region40: #{tpu_custom_call.1} parent=23 // pred_fallthru
          _
      $region24: #{tpu_custom_call.1} parent=5 // pred_fallthru
        _
      %p327 = scmp.le.s32.totalorder 1, %s24
      %p328 = scmp.lt.s32.totalorder %s24, 3
      %p329 = pnand %p327, %p328
      %p330 = pneg %p329
      // Predicated region
      $region41: #{tpu_custom_call.1} parent=5 // pred_check
        _
      $region42: #{tpu_custom_call.1} parent=5 // pred_check_branch
        %332 = sbr.rel (%p329) target = $region44
      $region43: #{tpu_custom_call.1} parent=5 // pred_region
        %s333 = ssub.s32 %s24, 1
        %s334 = sand.u32 %s53, 1
        %s335 = scalar_lea.sflag [#allocation6], %s334
        %s336 = sand.u32 %s53, 1
        %s337 = smul.addr %s336, 16
        %s338 = scalar_lea.vmem [#allocation5], %s337
        // Predicated region
        $region45: #{tpu_custom_call.1} parent=43 // pred_check
          %p339 = pneg %p66
        $region46: #{tpu_custom_call.1} parent=43 // pred_check_branch
          %341 = sbr.rel (%p339) target = $region48
        $region47: #{tpu_custom_call.1} parent=43 // pred_region
          %342 = dma.done %s335, 256
        $region48: #{tpu_custom_call.1} parent=43 // pred_fallthru
          _
        %s343 = sand.u32 %s29, 1
        %s344 = scalar_lea.sflag [#allocation9], %s343
        %s345 = sand.u32 %s83, 1
        %s346 = smul.addr %s345, 16
        %s347 = scalar_lea.vmem [#allocation8], %s346
        // Predicated region
        $region49: #{tpu_custom_call.1} parent=43 // pred_check
          %p348 = pneg %p96
        $region50: #{tpu_custom_call.1} parent=43 // pred_check_branch
          %350 = sbr.rel (%p348) target = $region52
        $region51: #{tpu_custom_call.1} parent=43 // pred_region
          %351 = dma.done %s344, 256
        $region52: #{tpu_custom_call.1} parent=43 // pred_fallthru
          _
        %s352 = sand.u32 %s29, 1
        %s353 = scalar_lea.sflag [#allocation9], %s352
        %s354 = sand.u32 %s111, 1
        %s355 = smul.addr %s354, 16
        %s356 = scalar_lea.vmem [#allocation10], %s355
        // Predicated region
        $region53: #{tpu_custom_call.1} parent=43 // pred_check
          %p357 = pneg %p124
        $region54: #{tpu_custom_call.1} parent=43 // pred_check_branch
          %359 = sbr.rel (%p357) target = $region56
        $region55: #{tpu_custom_call.1} parent=43 // pred_region
          %360 = dma.done %s353, 256
        $region56: #{tpu_custom_call.1} parent=43 // pred_fallthru
          _
        %s361 = sand.u32 %s139, 1
        %s362 = scalar_lea.sflag [#allocation12], %s361
        %s363 = sand.u32 %s139, 1
        %s364 = smul.addr %s363, 16
        %s365 = scalar_lea.vmem [#allocation11], %s364
        // Predicated region
        $region57: #{tpu_custom_call.1} parent=43 // pred_check
          %p366 = pneg %p152
        $region58: #{tpu_custom_call.1} parent=43 // pred_check_branch
          %368 = sbr.rel (%p366) target = $region60
        $region59: #{tpu_custom_call.1} parent=43 // pred_region
          %369 = dma.done %s362, 256
        $region60: #{tpu_custom_call.1} parent=43 // pred_fallthru
          _
        %s370 = sand.u32 %s53, 1
        %s371 = scalar_lea.sflag [#allocation6], %s370
        %s372 = sand.u32 %s53, 1
        %s373 = smul.addr %s372, 16
        %s374 = scalar_lea.vmem [#allocation5], %s373
        %p375 = pneg %p66
        %p376 = pneg %p63
        %s377 = sand.u32 %s29, 1
        %s378 = scalar_lea.sflag [#allocation9], %s377
        %s379 = sand.u32 %s83, 1
        %s380 = smul.addr %s379, 16
        %s381 = scalar_lea.vmem [#allocation8], %s380
        %p382 = pneg %p96
        %p383 = pneg %p93
        %s384 = sand.u32 %s29, 1
        %s385 = scalar_lea.sflag [#allocation9], %s384
        %s386 = sand.u32 %s111, 1
        %s387 = smul.addr %s386, 16
        %s388 = scalar_lea.vmem [#allocation10], %s387
        %p389 = pneg %p124
        %p390 = pneg %p121
        %s391 = sand.u32 %s139, 1
        %s392 = scalar_lea.sflag [#allocation12], %s391
        %s393 = sand.u32 %s139, 1
        %s394 = smul.addr %s393, 16
        %s395 = scalar_lea.vmem [#allocation11], %s394
        %p396 = pneg %p152
        %p397 = pneg %p149
        %p398 = pneg %p173
        %p399 = pneg %p170
        %p400 = pneg %p194
        %p401 = pneg %p191
        %p402 = pneg %p220
        %p403 = pneg %p217
        %s404 = sand.u32 %s207, 1
        %s405 = scalar_lea.sflag [#allocation7], %s404
        %s406 = sand.u32 %s207, 1
        %s407 = smul.addr %s406, 8
        %s408 = scalar_lea.vmem [#allocation13], %s407
        %s409 = ssub.s32 1, %s33
        %s410 = smul.u32 %s409, %s34
        %s411 = smul.u32 2, %s410
        %s412 = ssub.s32 1, %s33
        %s413 = smul.u32 %s412, %s34
        %s414 = smul.u32 2, %s413
        %s415 = smul.u32 %s33, %s34
        %s416 = smul.u32 2, %s415
        %s417 = smul.u32 %s33, %s34
        %s418 = smul.u32 2, %s417
        %p419 = scmp.eq.s32.totalorder %s34, 0
        // Predicated region
        $region61: #{tpu_custom_call.1} parent=43 // pred_check
          %p420 = pneg %p419
        $region62: #{tpu_custom_call.1} parent=43 // pred_check_branch
          %422 = sbr.rel (%p420) target = $region64
        $region63: #{tpu_custom_call.1} parent=43 // pred_region
          %423 = vst [vmem:[#allocation2] sm:$0x3f] 0.0
          %424 = vst [vmem:[#allocation2 + $0x8] sm:$0x3f] 0.0
          %425 = vst [vmem:[#allocation3] sm:$0x3f] 0.0
          %426 = vst [vmem:[#allocation3 + $0x8] sm:$0x3f] 0.0
          %427 = vst [vmem:[#allocation4] sm:$0x3f] 0.0
          %428 = vst [vmem:[#allocation4 + $0x8] sm:$0x3f] 0.0
        $region64: #{tpu_custom_call.1} parent=43 // pred_fallthru
          _
        %p429 = scmp.eq.s32.totalorder %s33, 0
        // Predicated region
        $region65: #{tpu_custom_call.1} parent=43 // pred_check
          %p430 = pneg %p429
        $region66: #{tpu_custom_call.1} parent=43 // pred_check_branch
          %432 = sbr.rel (%p430) target = $region68
        $region67: #{tpu_custom_call.1} parent=43 // pred_region
          %v433 = vld [vmem:[%s338] sm:$0x3f]
          %v434 = vld [vmem:[%s338 + $0x8] sm:$0x3f]
          %v435 = vld [vmem:[%s347] sm:$0x3f]
          %v436 = vld [vmem:[%s347 + $0x8] sm:$0x3f]
          %v437 = vsub.f32 %v433, %v435
          %v438 = vsub.f32 %v434, %v436
          %v439 = vand.u32 2147483647, %v437
          %v440 = vand.u32 2147483647, %v438
          %v441 = vld [vmem:[#allocation2] sm:$0x3f]
          %v442 = vld [vmem:[#allocation2 + $0x8] sm:$0x3f]
          %v443 = vadd.f32 %v441, %v439
          %v444 = vadd.f32 %v442, %v440
          %445 = vst [vmem:[#allocation2] sm:$0x3f] %v443
          %446 = vst [vmem:[#allocation2 + $0x8] sm:$0x3f] %v444
        $region68: #{tpu_custom_call.1} parent=43 // pred_fallthru
          _
        %p447 = scmp.eq.s32.totalorder %s33, 1
        // Predicated region
        $region69: #{tpu_custom_call.1} parent=43 // pred_check
          %p448 = pneg %p447
        $region70: #{tpu_custom_call.1} parent=43 // pred_check_branch
          %450 = sbr.rel (%p448) target = $region72
        $region71: #{tpu_custom_call.1} parent=43 // pred_region
          %v451 = vld [vmem:[%s356] sm:$0x3f]
          %v452 = vld [vmem:[%s356 + $0x8] sm:$0x3f]
          %v453 = vld [vmem:[%s365] sm:$0x3f]
          %v454 = vld [vmem:[%s365 + $0x8] sm:$0x3f]
          %v455 = vld [vmem:[#allocation3] sm:$0x3f]
          %v456 = vld [vmem:[#allocation3 + $0x8] sm:$0x3f]
          %v457 = vadd.f32 %v455, %v451
          %v458 = vadd.f32 %v456, %v452
          %459 = vst [vmem:[#allocation3] sm:$0x3f] %v457
          %460 = vst [vmem:[#allocation3 + $0x8] sm:$0x3f] %v458
          %v461 = vld [vmem:[#allocation4] sm:$0x3f]
          %v462 = vld [vmem:[#allocation4 + $0x8] sm:$0x3f]
          %v463 = vadd.f32 %v461, %v453
          %v464 = vadd.f32 %v462, %v454
          %465 = vst [vmem:[#allocation4] sm:$0x3f] %v463
          %466 = vst [vmem:[#allocation4 + $0x8] sm:$0x3f] %v464
        $region72: #{tpu_custom_call.1} parent=43 // pred_fallthru
          _
        %p467 = pnand %p429, %p419
        %p468 = pneg %p467
        // Predicated region
        $region73: #{tpu_custom_call.1} parent=43 // pred_check
          _
        $region74: #{tpu_custom_call.1} parent=43 // pred_check_branch
          %470 = sbr.rel (%p467) target = $region76
        $region75: #{tpu_custom_call.1} parent=43 // pred_region
          %v471 = vld [vmem:[#allocation2] sm:$0x3f]
          %v472 = vld [vmem:[#allocation2 + $0x8] sm:$0x3f]
          %vm473 = vcmask 1045504
          %v474 = vsel %vm473, %v471, 0.0
          %v475 = vsel %vm473, %v472, 0.0
          %v476 = vadd.f32 %v474, %v475
          %477 = vadd.xlane.f32.xlu0 %v476
          %v478 = vpop.xlane.xlu0 %477
          %v479 = vrot.slane %v478, 4
          %v480 = vadd.f32 %v478, %v479
          %v481 = vrot.slane %v480, 2
          %v482 = vadd.f32 %v480, %v481
          %v483 = vrot.slane %v482, 1
          %v484 = vadd.f32 %v482, %v483
          %s485 = vtos %v484
          %s486 = smul.f32 %s485, 0.0006510417
          %v487 = vstv %s486
          %488 = vst [vmem:[%s408] sm:$0xff] %v487
        $region76: #{tpu_custom_call.1} parent=43 // pred_fallthru
          _
        %p489 = pnand %p447, %p419
        %p490 = pneg %p489
        // Predicated region
        $region77: #{tpu_custom_call.1} parent=43 // pred_check
          _
        $region78: #{tpu_custom_call.1} parent=43 // pred_check_branch
          %492 = sbr.rel (%p489) target = $region80
        $region79: #{tpu_custom_call.1} parent=43 // pred_region
          %v493 = vld [vmem:[#allocation3] sm:$0x3f]
          %v494 = vld [vmem:[#allocation3 + $0x8] sm:$0x3f]
          %vm495 = vcmask 1045504
          %v496 = vsel %vm495, %v493, 0.0
          %v497 = vsel %vm495, %v494, 0.0
          %v498 = vadd.f32 %v496, %v497
          %499 = vadd.xlane.f32.xlu0 %v498
          %v500 = vpop.xlane.xlu0 %499
          %v501 = vmul.f32 %v500, 0.00390625
          %v502 = vld [vmem:[#allocation4] sm:$0x3f]
          %v503 = vld [vmem:[#allocation4 + $0x8] sm:$0x3f]
          %v504 = vsel %vm495, %v502, 0.0
          %v505 = vsel %vm495, %v503, 0.0
          %v506 = vadd.f32 %v504, %v505
          %507 = vadd.xlane.f32.xlu0 %v506
          %v508 = vpop.xlane.xlu0 %507
          %v509 = vmul.f32 %v508, 0.00390625
          %v510 = vld [vmem:[%s4] sm:$0x3f]
          %v511 = vld [vmem:[%s5] sm:$0x3]
          %v512 = vmul.f32 %v501, %v510
          %vm513 = vcmask 48128
          %v515 = vsel %vm513, %v511, 0
          %v518 = vsel %vm495, %v512, 0
          %520 = vmatprep.subr.mxu0 0.0
          %521 = vmatpush1.msra.mxu0 %v518
          %522 = vmatprep.subr.mxu0 0.0
          %523 = vmatpush1.msra.mxu0 0.0
          %524 = vmatprep.subr.mxu0 0.0
          %525 = vmatpush1.msra.mxu0 0.0
          %526 = vmatprep.subr.mxu0 0.0
          %527 = vmatpush1.msra.mxu0 0.0
          %528 = vmatprep.subr.mxu0 0.0
          %529 = vmatpush1.msra.mxu0 0.0
          %530 = vmatprep.subr.mxu0 0.0
          %531 = vmatpush1.msra.mxu0 0.0
          %532 = vmatprep.subr.mxu0 0.0
          %533 = vmatpush1.msra.mxu0 0.0
          %534 = vmatprep.subr.mxu0 0.0
          %535 = vmatpush1.msra.mxu0 0.0
          %536 = vmatprep.subr.mxu0 0.0
          %537 = vmatpush1.msra.mxu0 0.0
          %538 = vmatprep.subr.mxu0 0.0
          %539 = vmatpush1.msra.mxu0 0.0
          %540 = vmatprep.subr.mxu0 0.0
          %541 = vmatpush1.msra.mxu0 0.0
          %542 = vmatprep.subr.mxu0 0.0
          %543 = vmatpush1.msra.mxu0 0.0
          %544 = vmatprep.subr.mxu0 0.0
          %545 = vmatpush1.msra.mxu0 0.0
          %546 = vmatprep.subr.mxu0 0.0
          %547 = vmatpush1.msra.mxu0 0.0
          %548 = vmatprep.subr.mxu0 0.0
          %549 = vmatpush1.msra.mxu0 0.0
          %550 = vmatprep.subr.mxu0 0.0
          %551 = vmatpush1.msra.mxu0 0.0
          %552 = vmatprep.subr.mxu0 0.0
          %553 = vmatpush1.msra.mxu0 0.0
          %554 = vmatprep.subr.mxu0 0.0
          %555 = vmatpush1.msra.mxu0 0.0
          %556 = vmatprep.subr.mxu0 0.0
          %557 = vmatpush1.msra.mxu0 0.0
          %558 = vmatprep.subr.mxu0 0.0
          %559 = vmatpush1.msra.mxu0 0.0
          %560 = vmatprep.subr.mxu0 0.0
          %561 = vmatpush1.msra.mxu0 0.0
          %562 = vmatprep.subr.mxu0 0.0
          %563 = vmatpush1.msra.mxu0 0.0
          %564 = vmatprep.subr.mxu0 0.0
          %565 = vmatpush1.msra.mxu0 0.0
          %566 = vmatprep.subr.mxu0 0.0
          %567 = vmatpush1.msra.mxu0 0.0
          %568 = vmatprep.subr.mxu0 0.0
          %569 = vmatpush1.msra.mxu0 0.0
          %570 = vmatprep.subr.mxu0 0.0
          %571 = vmatpush1.msra.mxu0 0.0
          %572 = vmatprep.subr.mxu0 0.0
          %573 = vmatpush1.msra.mxu0 0.0
          %574 = vmatprep.subr.mxu0 0.0
          %575 = vmatpush1.msra.mxu0 0.0
          %576 = vmatprep.subr.mxu0 0.0
          %577 = vmatpush1.msra.mxu0 0.0
          %578 = vmatprep.subr.mxu0 0.0
          %579 = vmatpush1.msra.mxu0 0.0
          %580 = vmatprep.subr.mxu0 0.0
          %581 = vmatpush1.msra.mxu0 0.0
          %582 = vmatprep.subr.mxu0 0.0
          %583 = vmatpush1.msra.mxu0 0.0
          %584 = vmatprep.mubr.f32.mxu0 0.0
          %585 = vmatmul.mubr.f32.gmra.mrb[0].mxu0 %v515
          %v586 = vpop.f32.mrb[0].mxu0
          %v587 = vadd.f32 0.0, %v586
          %v588 = vpop.f32.mrb[0].mxu0
          %589 = vdwg.mxu0
          %v590 = vmul.f32 %v509, %v510
          %v592 = vsel %vm495, %v590, 0
          %594 = vmatprep.subr.mxu0 0.0
          %595 = vmatpush1.msra.mxu0 %v592
          %596 = vmatprep.subr.mxu0 0.0
          %597 = vmatpush1.msra.mxu0 0.0
          %598 = vmatprep.subr.mxu0 0.0
          %599 = vmatpush1.msra.mxu0 0.0
          %600 = vmatprep.subr.mxu0 0.0
          %601 = vmatpush1.msra.mxu0 0.0
          %602 = vmatprep.subr.mxu0 0.0
          %603 = vmatpush1.msra.mxu0 0.0
          %604 = vmatprep.subr.mxu0 0.0
          %605 = vmatpush1.msra.mxu0 0.0
          %606 = vmatprep.subr.mxu0 0.0
          %607 = vmatpush1.msra.mxu0 0.0
          %608 = vmatprep.subr.mxu0 0.0
          %609 = vmatpush1.msra.mxu0 0.0
          %610 = vmatprep.subr.mxu0 0.0
          %611 = vmatpush1.msra.mxu0 0.0
          %612 = vmatprep.subr.mxu0 0.0
          %613 = vmatpush1.msra.mxu0 0.0
          %614 = vmatprep.subr.mxu0 0.0
          %615 = vmatpush1.msra.mxu0 0.0
          %616 = vmatprep.subr.mxu0 0.0
          %617 = vmatpush1.msra.mxu0 0.0
          %618 = vmatprep.subr.mxu0 0.0
          %619 = vmatpush1.msra.mxu0 0.0
          %620 = vmatprep.subr.mxu0 0.0
          %621 = vmatpush1.msra.mxu0 0.0
          %622 = vmatprep.subr.mxu0 0.0
          %623 = vmatpush1.msra.mxu0 0.0
          %624 = vmatprep.subr.mxu0 0.0
          %625 = vmatpush1.msra.mxu0 0.0
          %626 = vmatprep.subr.mxu0 0.0
          %627 = vmatpush1.msra.mxu0 0.0
          %628 = vmatprep.subr.mxu0 0.0
          %629 = vmatpush1.msra.mxu0 0.0
          %630 = vmatprep.subr.mxu0 0.0
          %631 = vmatpush1.msra.mxu0 0.0
          %632 = vmatprep.subr.mxu0 0.0
          %633 = vmatpush1.msra.mxu0 0.0
          %634 = vmatprep.subr.mxu0 0.0
          %635 = vmatpush1.msra.mxu0 0.0
          %636 = vmatprep.subr.mxu0 0.0
          %637 = vmatpush1.msra.mxu0 0.0
          %638 = vmatprep.subr.mxu0 0.0
          %639 = vmatpush1.msra.mxu0 0.0
          %640 = vmatprep.subr.mxu0 0.0
          %641 = vmatpush1.msra.mxu0 0.0
          %642 = vmatprep.subr.mxu0 0.0
          %643 = vmatpush1.msra.mxu0 0.0
          %644 = vmatprep.subr.mxu0 0.0
          %645 = vmatpush1.msra.mxu0 0.0
          %646 = vmatprep.subr.mxu0 0.0
          %647 = vmatpush1.msra.mxu0 0.0
          %648 = vmatprep.subr.mxu0 0.0
          %649 = vmatpush1.msra.mxu0 0.0
          %650 = vmatprep.subr.mxu0 0.0
          %651 = vmatpush1.msra.mxu0 0.0
          %652 = vmatprep.subr.mxu0 0.0
          %653 = vmatpush1.msra.mxu0 0.0
          %654 = vmatprep.subr.mxu0 0.0
          %655 = vmatpush1.msra.mxu0 0.0
          %656 = vmatprep.subr.mxu0 0.0
          %657 = vmatpush1.msra.mxu0 0.0
          %658 = vmatprep.mubr.f32.mxu0 0.0
          %659 = vmatmul.mubr.f32.gmra.mrb[0].mxu0 %v515
          %v660 = vpop.f32.mrb[0].mxu0
          %v661 = vadd.f32 0.0, %v660
          %v662 = vpop.f32.mrb[0].mxu0
          %663 = vdwg.mxu0
          %v664 = vmul.f32 %v587, %v661
          %vm665 = vcmask 517120
          %v666 = vsel %vm665, %v664, 0.0
          %667 = vadd.xlane.f32.xlu0 %v666
          %v668 = vpop.xlane.xlu0 %667
          %v669 = vmul.f32 %v587, %v587
          %v670 = vsel %vm665, %v669, 0.0
          %671 = vadd.xlane.f32.xlu0 %v670
          %v672 = vpop.xlane.xlu0 %671
          %v673 = vrsqrt.pop %v672
          %v674 = vmul.f32 %v672, %v673
          %vm675 = vcmp.eq.f32.partialorder %v672, inf
          %v676 = vsel %vm675, %v672, %v674
          %vm677 = vcmp.eq.f32.partialorder %v672, 0.0
          %v678 = vand.u32 %v672, 2147483648
          %v679 = vsel %vm677, %v678, %v676
          %v680 = vmul.f32 %v661, %v661
          %v681 = vsel %vm665, %v680, 0.0
          %682 = vadd.xlane.f32.xlu0 %v681
          %v683 = vpop.xlane.xlu0 %682
          %v684 = vrsqrt.pop %v683
          %v685 = vmul.f32 %v683, %v684
          %vm686 = vcmp.eq.f32.partialorder %v683, inf
          %v687 = vsel %vm686, %v683, %v685
          %vm688 = vcmp.eq.f32.partialorder %v683, 0.0
          %v689 = vand.u32 %v683, 2147483648
          %v690 = vsel %vm688, %v689, %v687
          %v691 = vmul.f32 %v679, %v690
          %v692 = vmax.f32 %v691, 1e-08
          %v693 = vrcp.pop %v692
          %v694 = vmul.f32 %v668, %v693
          %vm695 = vcmask 1024
          %v696 = vsel %vm695, %v694, 0.0
          %697 = vadd.xlane.f32.xlu0 %v696
          %v698 = vpop.xlane.xlu0 %697
          %v699 = vrot.slane %v698, 4
          %v700 = vadd.f32 %v698, %v699
          %v701 = vrot.slane %v700, 2
          %v702 = vadd.f32 %v700, %v701
          %v703 = vrot.slane %v702, 1
          %v704 = vadd.f32 %v702, %v703
          %s705 = vtos %v704
          %s706 = smul.f32 %s705, 0.5
          %s707 = ssub.f32 1.0, %s706
          %v708 = vstv %s707
          %709 = vst [vmem:[%s408] sm:$0xff] %v708
        $region80: #{tpu_custom_call.1} parent=43 // pred_fallthru
          _
        %s710 = sand.u32 %s207, 1
        %s711 = scalar_lea.sflag [#allocation7], %s710
        %s712 = sand.u32 %s207, 1
        %s713 = smul.addr %s712, 8
        %s714 = scalar_lea.vmem [#allocation13], %s713
        // Predicated region
        $region81: #{tpu_custom_call.1} parent=43 // pred_check
          %p715 = pneg %p217
        $region82: #{tpu_custom_call.1} parent=43 // pred_check_branch
          %717 = sbr.rel (%p715) target = $region84
        $region83: #{tpu_custom_call.1} parent=43 // pred_region
          %s719 = ssub.s32 128, 128
          %720 = vsyncadd %s711, %s719
          %s721 = smul.addr %s33, 128
          %s722 = scalar_lea.hbm %s6, %s721
          %s724 = sshll.u32 %s714, 4
          %s725 = int_to_ptr.vmem [resolvable:$true] %s724
          %727 = dma.vmem_to_hbm [thread:$0]  %s725, 128, %s722, %s711
        $region84: #{tpu_custom_call.1} parent=43 // pred_fallthru
          _
      $region44: #{tpu_custom_call.1} parent=5 // pred_fallthru
        _
      %p728 = scmp.le.s32.totalorder 2, %s24
      // Predicated region
      $region85: #{tpu_custom_call.1} parent=5 // pred_check
        %p729 = pneg %p728
      $region86: #{tpu_custom_call.1} parent=5 // pred_check_branch
        %731 = sbr.rel (%p729) target = $region88
      $region87: #{tpu_custom_call.1} parent=5 // pred_region
        %s732 = ssub.s32 %s24, 2
        // Predicated region
        $region89: #{tpu_custom_call.1} parent=87 // pred_check
          %p733 = pneg %p223
        $region90: #{tpu_custom_call.1} parent=87 // pred_check_branch
          %735 = sbr.rel (%p733) target = $region92
        $region91: #{tpu_custom_call.1} parent=87 // pred_region
          %s736 = sand.u32 %s208, 1
          %s737 = scalar_lea.sflag [#allocation7], %s736
          %s738 = sand.u32 %s208, 1
          %s739 = smul.addr %s738, 8
          %s740 = scalar_lea.vmem [#allocation13], %s739
          %741 = dma.done %s737, 128
        $region92: #{tpu_custom_call.1} parent=87 // pred_fallthru
          _
      $region88: #{tpu_custom_call.1} parent=5 // pred_fallthru
        _
    $region6: #{tpu_custom_call.1} parent=1 // loop_footer
      %s28 = sadd.s32 1, %s24
    $region7: #{tpu_custom_call.1} parent=1 // loop_footer_branch
      %23 = sbr.rel target = $region3
    $region8: #{tpu_custom_call.1} parent=1 // loop_exit
      _
    %742 = vsyncpa [#allocation6], 1
    %s743 = scalar_lea.sflag [#allocation6], 1
    %744 = vsyncpa %s743, 1
    %745 = vsyncpa [#allocation9], 1
    %s746 = scalar_lea.sflag [#allocation9], 1
    %747 = vsyncpa %s746, 1
    %748 = vsyncpa [#allocation12], 1
    %s749 = scalar_lea.sflag [#allocation12], 1
    %750 = vsyncpa %s749, 1
    %751 = vsyncpa [#allocation7], 1
    %s752 = scalar_lea.sflag [#allocation7], 1
    %753 = vsyncpa %s752, 1

</llo_original>
